<compile_context>
chip_gen: v6e
topology: v6e:2x2x1
jax: 0.10.0
libtpu: 0.0.40
codegen_flags: <defaults>
</compile_context>

<pallas_src>
import jax
import jax.numpy as jnp
from jax.experimental import pallas as pl
from jax.experimental.pallas import tpu as pltpu


def _round_up(x, m):
    return ((x + m - 1) // m) * m


def _default_num_parallel():
    """2 on 2-TensorCore chips (v7x), else 1 (v5e / v6e have a single TC)."""
    try:
        kind = jax.devices()[0].device_kind.lower()
    except Exception:
        return 1
    return 2 if "7" in kind else 1


def gnn_attn_kernel(x_ref, ppr_ref, idx_ref, w0t_ref, w1t_ref, w2t_ref, out_ref):
    """One edge-tile of the GNNAttn forward pass (edges on lanes).

    x_ref   : [1, F, 2*TE] bf16   (src tile columns [:TE], nbr tile columns [TE:])
    ppr_ref : [1, TE] f32         idx_ref : [1, TE] i32
    w0t : [H, F] bf16   w1t : [H, H] bf16   w2t = [w2 | w2 @ Wq @ Wk^T]^T : [2C, H] bf16
    out_ref : [1, C, N] f32 accumulator (same output block for every tile of this part).
    """
    t = pl.program_id(1)

    @pl.when(t == 0)
    def _init():
        out_ref[...] = jnp.zeros_like(out_ref)

    te = x_ref.shape[2] // 2
    c = out_ref.shape[1]
    n_groups = out_ref.shape[2]

    # --- shared MLP, src & nbr stacked along lanes: one MXU pass per layer ---
    x = x_ref[0]                                                               # [F, 2TE] bf16
    h = jnp.dot(w0t_ref[...], x, preferred_element_type=jnp.float32)          # [H, 2TE]
    h = jnp.maximum(h, 0.0).astype(jnp.bfloat16)
    h = jnp.dot(w1t_ref[...], h, preferred_element_type=jnp.float32)          # [H, 2TE]
    h = jnp.maximum(h, 0.0).astype(jnp.bfloat16)
    logits = jnp.dot(w2t_ref[...], h, preferred_element_type=jnp.float32)     # [2C, 2TE]

    # rows [:C]  = w2^T  @ h   -> class logits
    # rows [C:]  = (w2 @ Wq @ Wk^T)^T @ h -> folded query projection
    qm_t = logits[c:, :te]                                                     # [C, TE] (src)
    x_nbr_t = logits[:c, te:]                                                  # [C, TE] (nbr)

    # --- attention head (projections folded in the wrapper) ---
    e_attn = jax.nn.sigmoid(jnp.sum(qm_t * x_nbr_t, axis=0, keepdims=True))    # [1, TE]
    scale = e_attn * ppr_ref[...]                                              # [1, TE]
    # Note: bf16 rounding of the weighted values here; sums still accumulate in f32.
    weighted = (x_nbr_t * scale).astype(jnp.bfloat16)                          # [C, TE]

    # --- scatter(..., reduce='sum') via one-hot matmul, transposed ([C, N] out) ---
    rows = jax.lax.broadcasted_iota(jnp.int32, (n_groups, te), 0)              # [N, TE]
    onehot = (rows == idx_ref[...]).astype(jnp.bfloat16)                       # [N, TE]
    out_ref[0] += jax.lax.dot_general(                                          # 'ct,nt->cn'
        weighted, onehot,
        dimension_numbers=(((1,), (1,)), ((), ())),
        preferred_element_type=jnp.float32)                                     # [C, N]


def gnn_attn_forward(source_attr, neighbor_attr, ppr_scores, ppr_idx, params,
                     num_groups, *, num_parallel=None, max_edge_tile=2048):
    """GNNAttn forward (inference; dropout = identity).  Returns [num_groups, C]."""
    E, F = source_attr.shape
    H = params["w0"].shape[1]
    C = params["w2"].shape[1]

    # Fold the attention projections into the last MLP layer (exact in f32):
    #   qm = h_src @ w2 @ (Wq @ Wk^T)  ->  precompute w2m = w2 @ Wq @ Wk^T  [H, C]
    # and stack [w2 | w2m] so one matmul yields both x_nbr and qm.
    m = params["wq"] @ params["wk"].T                                   # [C, C] f32
    w2m = params["w2"] @ m                                              # [H, C] f32
    w2cat_t = jnp.concatenate([params["w2"], w2m], axis=1).T.astype(jnp.bfloat16)  # [2C, H]
    w0_t = params["w0"].T.astype(jnp.bfloat16)                          # [H, F]
    w1_t = params["w1"].T.astype(jnp.bfloat16)                          # [H, H]

    # Parallel split only where there are 2 TensorCores.
    npar = _default_num_parallel() if num_parallel is None else max(1, int(num_parallel))

    # Edge tiling: TE is a multiple of 128 (edge dim sits on lanes everywhere).
    te = min(_round_up(max_edge_tile, 128), _round_up(pl.cdiv(E, npar), 128))
    tiles_per_part = pl.cdiv(E, npar * te)
    n_tiles = npar * tiles_per_part
    e_pad = n_tiles * te
    pad = e_pad - E

    # Padded edges get ppr_score = 0 -> they contribute exactly zero to the scatter-sum.
    src_b = jnp.pad(source_attr.astype(jnp.bfloat16), ((0, pad), (0, 0)))
    nbr_b = jnp.pad(neighbor_attr.astype(jnp.bfloat16), ((0, pad), (0, 0)))
    # Per-tile interleave + transpose (wrapper-side layout plumbing; bf16 streaming):
    # tile t holds columns [src edges of tile t | nbr edges of tile t].
    src_t = src_b.reshape(n_tiles, te, F)
    nbr_t = nbr_b.reshape(n_tiles, te, F)
    x_tiles = jnp.transpose(jnp.concatenate([src_t, nbr_t], axis=1), (0, 2, 1))  # [tiles, F, 2*te]

    ppr_row = jnp.pad(ppr_scores.astype(jnp.float32), (0, pad)).reshape(1, e_pad)
    idx_row = jnp.pad(ppr_idx.astype(jnp.int32), (0, pad)).reshape(1, e_pad)

    n_t = tiles_per_part
    tile_map = lambda p, t: (p * n_t + t, 0, 0)
    col_map = lambda p, t: (0, p * n_t + t)
    full = lambda p, t: (0, 0)

    partials = pl.pallas_call(
        gnn_attn_kernel,
        out_shape=jax.ShapeDtypeStruct((npar, C, num_groups), jnp.float32),
        grid_spec=pltpu.PrefetchScalarGridSpec(
            num_scalar_prefetch=0,
            grid=(npar, n_t),
            in_specs=[
                pl.BlockSpec((1, F, 2 * te), tile_map),   # stacked src/nbr tile (bf16)
                pl.BlockSpec((1, te), col_map),           # ppr_scores tile (lane-major)
                pl.BlockSpec((1, te), col_map),           # ppr_idx tile (lane-major)
                pl.BlockSpec((H, F), full),               # w0^T (resident)
                pl.BlockSpec((H, H), full),               # w1^T (resident)
                pl.BlockSpec((2 * C, H), full),           # [w2 | w2@Wq@Wk^T]^T (resident)
            ],
            out_specs=pl.BlockSpec((1, C, num_groups), lambda p, t: (p, 0, 0)),
        ),
        compiler_params=pltpu.CompilerParams(
            dimension_semantics=("parallel", "arbitrary")),
    )(x_tiles, ppr_row, idx_row, w0_t, w1_t, w2cat_t)

    # Merge per-core partial scatter-sums and transpose back to [N, C] (tiny).
    return partials.sum(axis=0).T


if __name__ == "__main__":
    # Small shapes consistent with the module:
    # num_features=16, hidden_size=32, nlayers=3, num_classes=8, head_size=32
    E, F, H, C, HEAD, N = 64, 16, 32, 8, 32, 16

    key = jax.random.PRNGKey(0)
    ks = jax.random.split(key, 8)
    source_attr = jax.random.normal(ks[0], (E, F), jnp.float32)
    neighbor_attr = jax.random.normal(ks[1], (E, F), jnp.float32)
    ppr_scores = jax.random.uniform(ks[2], (E,), jnp.float32)
    # sorted group ids (scatter target); dim_size = ppr_idx[-1] + 1
    ppr_idx = jnp.repeat(jnp.arange(N, dtype=jnp.int32), E // N)
    neighbor_idx = jnp.arange(E, dtype=jnp.int32)  # passthrough in torch; unused in compute

    # Deterministic parameter init (stored as [in, out] = PyTorch weight.T, bias=False)
    params = {
        "w0": 0.1 * jax.random.normal(ks[3], (F, H), jnp.float32),     # MixedLinear(F, H)
        "w1": 0.1 * jax.random.normal(ks[4], (H, H), jnp.float32),     # Linear(H, H)
        "w2": 0.1 * jax.random.normal(ks[5], (H, C), jnp.float32),     # Linear(H, C)
        "wq": 0.1 * jax.random.normal(ks[6], (C, HEAD), jnp.float32),  # qk_proj
        "wk": 0.1 * jax.random.normal(ks[7], (C, HEAD), jnp.float32),  # k_proj
    }

    num_groups = int(ppr_idx[-1]) + 1  # dim_size = group_idx[-1] + 1 (module semantics)

    out = gnn_attn_forward(source_attr, neighbor_attr, ppr_scores, ppr_idx,
                           params, num_groups)
    jax.block_until_ready(out)

    # Pure-JAX f32 reference for the same forward pass
    def mlp_ref(x):
        h = jnp.maximum(x @ params["w0"], 0.0)
        h = jnp.maximum(h @ params["w1"], 0.0)
        return h @ params["w2"]

    xs, xn = mlp_ref(source_attr), mlp_ref(neighbor_attr)
    e_attn = jax.nn.sigmoid(jnp.sum((xs @ params["wq"]) * (xn @ params["wk"]), axis=-1))
    weighted = xn * e_attn[:, None] * ppr_scores[:, None]
    ref = jax.ops.segment_sum(weighted, ppr_idx, num_segments=num_groups)

    assert out.shape == (num_groups, C)
    assert jnp.allclose(out, ref, atol=1e-2, rtol=1e-2)
    print("KERNEL_OK")
</pallas_src>

<mosaic_0001>
module attributes {stable_mosaic.version = 11 : i64} {
  func.func @gnn_attn_kernel(%arg0: i32, %arg1: i32, %arg2: memref<1x16x256xbf16, #tpu.memory_space<vmem>>, %arg3: memref<1x128xf32, #tpu.memory_space<vmem>>, %arg4: memref<1x128xi32, #tpu.memory_space<vmem>>, %arg5: memref<32x16xbf16, #tpu.memory_space<vmem>>, %arg6: memref<32x32xbf16, #tpu.memory_space<vmem>>, %arg7: memref<16x32xbf16, #tpu.memory_space<vmem>>, %arg8: memref<1x8x16xf32, #tpu.memory_space<vmem>>) attributes {dimension_semantics = [#tpu.dimension_semantics<parallel>, #tpu.dimension_semantics<arbitrary>], iteration_bounds = array<i64: 1, 1>, scalar_prefetch = 0 : i64, scratch_operands = 0 : i64, tpu.core_type = #tpu.core_type<tc>, window_params = [{transform_indices = @transform_0, window_bounds = array<i64: 1, 16, 256>}, {transform_indices = @transform_1, window_bounds = array<i64: 1, 128>}, {transform_indices = @transform_2, window_bounds = array<i64: 1, 128>}, {pipeline_mode = #tpu.pipeline_mode<synchronous>, transform_indices = @transform_3, window_bounds = array<i64: 32, 16>}, {pipeline_mode = #tpu.pipeline_mode<synchronous>, transform_indices = @transform_4, window_bounds = array<i64: 32, 32>}, {pipeline_mode = #tpu.pipeline_mode<synchronous>, transform_indices = @transform_5, window_bounds = array<i64: 16, 32>}, {transform_indices = @transform_6, window_bounds = array<i64: 1, 8, 16>}]} {
    %c0_i32 = arith.constant 0 : i32
    %0 = arith.cmpi eq, %arg1, %c0_i32 : i32
    %1 = arith.extui %0 : i1 to i32
    %c0_i32_0 = arith.constant 0 : i32
    %2 = arith.cmpi ne, %1, %c0_i32_0 : i32
    scf.if %2 {
      %cst_26 = arith.constant 0.000000e+00 : f32
      %46 = vector.broadcast %cst_26 : f32 to vector<1x8x16xf32>
      %c0_27 = arith.constant 0 : index
      %c0_28 = arith.constant 0 : index
      %c0_29 = arith.constant 0 : index
      %47 = vector.load %arg8[%c0_27, %c0_28, %c0_29] : memref<1x8x16xf32, #tpu.memory_space<vmem>>, vector<1x8x16xf32>
      tpu.vector_store %arg8[%c0_27, %c0_28, %c0_29], %46 {strides = array<i32>} : memref<1x8x16xf32, #tpu.memory_space<vmem>>, vector<1x8x16xf32>,
    } else {
    }
    %c0 = arith.constant 0 : index
    %c0_1 = arith.constant 0 : index
    %c0_2 = arith.constant 0 : index
    %3 = vector.load %arg2[%c0, %c0_1, %c0_2] : memref<1x16x256xbf16, #tpu.memory_space<vmem>>, vector<1x16x256xbf16>
    %4 = vector.shape_cast %3 : vector<1x16x256xbf16> to vector<16x256xbf16>
    %c0_3 = arith.constant 0 : index
    %c0_4 = arith.constant 0 : index
    %5 = vector.load %arg5[%c0_3, %c0_4] : memref<32x16xbf16, #tpu.memory_space<vmem>>, vector<32x16xbf16>
    %cst = arith.constant dense<0.000000e+00> : vector<32x256xf32>
    %6 = tpu.matmul %5, %4, %cst {dimension_numbers = #tpu.dot_dimension_numbers<[1], [0], [0], [1], [0, 0, 1, 1], [], []>} : vector<32x16xbf16>, vector<16x256xbf16>, vector<32x256xf32> -> vector<32x256xf32>
    %cst_5 = arith.constant 0.000000e+00 : f32
    %7 = vector.broadcast %cst_5 : f32 to vector<32x256xf32>
    %8 = arith.maximumf %6, %7 : vector<32x256xf32>
    %9 = arith.truncf %8 : vector<32x256xf32> to vector<32x256xbf16>
    %c0_6 = arith.constant 0 : index
    %c0_7 = arith.constant 0 : index
    %10 = vector.load %arg6[%c0_6, %c0_7] : memref<32x32xbf16, #tpu.memory_space<vmem>>, vector<32x32xbf16>
    %cst_8 = arith.constant dense<0.000000e+00> : vector<32x256xf32>
    %11 = tpu.matmul %10, %9, %cst_8 {dimension_numbers = #tpu.dot_dimension_numbers<[1], [0], [0], [1], [0, 0, 1, 1], [], []>} : vector<32x32xbf16>, vector<32x256xbf16>, vector<32x256xf32> -> vector<32x256xf32>
    %cst_9 = arith.constant 0.000000e+00 : f32
    %12 = vector.broadcast %cst_9 : f32 to vector<32x256xf32>
    %13 = arith.maximumf %11, %12 : vector<32x256xf32>
    %14 = arith.truncf %13 : vector<32x256xf32> to vector<32x256xbf16>
    %c0_10 = arith.constant 0 : index
    %c0_11 = arith.constant 0 : index
    %15 = vector.load %arg7[%c0_10, %c0_11] : memref<16x32xbf16, #tpu.memory_space<vmem>>, vector<16x32xbf16>
    %cst_12 = arith.constant dense<0.000000e+00> : vector<16x256xf32>
    %16 = tpu.matmul %15, %14, %cst_12 {dimension_numbers = #tpu.dot_dimension_numbers<[1], [0], [0], [1], [0, 0, 1, 1], [], []>} : vector<16x32xbf16>, vector<32x256xbf16>, vector<16x256xf32> -> vector<16x256xf32>
    %17 = vector.extract_strided_slice %16 {offsets = [8, 0], sizes = [8, 128], strides = [1, 1]} : vector<16x256xf32> to vector<8x128xf32>
    %18 = vector.extract_strided_slice %16 {offsets = [0, 128], sizes = [8, 128], strides = [1, 1]} : vector<16x256xf32> to vector<8x128xf32>
    %19 = arith.mulf %17, %18 : vector<8x128xf32>
    %cst_13 = arith.constant dense<0.000000e+00> : vector<128xf32>
    %20 = vector.multi_reduction <add>, %19, %cst_13 [0] : vector<8x128xf32> to vector<128xf32>
    %21 = vector.shape_cast %20 : vector<128xf32> to vector<1x128xf32>
    %22 = arith.negf %21 : vector<1x128xf32>
    %23 = math.exp %22 : vector<1x128xf32>
    %cst_14 = arith.constant 1.000000e+00 : f32
    %24 = vector.broadcast %cst_14 : f32 to vector<1x128xf32>
    %25 = arith.addf %24, %23 : vector<1x128xf32>
    %26 = arith.divf %24, %25 : vector<1x128xf32>
    %c0_15 = arith.constant 0 : index
    %c0_16 = arith.constant 0 : index
    %27 = vector.load %arg3[%c0_15, %c0_16] : memref<1x128xf32, #tpu.memory_space<vmem>>, vector<1x128xf32>
    %28 = arith.mulf %26, %27 : vector<1x128xf32>
    %29 = vector.broadcast %28 : vector<1x128xf32> to vector<8x128xf32>
    %30 = arith.mulf %18, %29 : vector<8x128xf32>
    %31 = arith.truncf %30 : vector<8x128xf32> to vector<8x128xbf16>
    %32 = tpu.iota {dimensions = array<i32: 0>} : vector<16x128xi32>
    %c0_17 = arith.constant 0 : index
    %c0_18 = arith.constant 0 : index
    %33 = vector.load %arg4[%c0_17, %c0_18] : memref<1x128xi32, #tpu.memory_space<vmem>>, vector<1x128xi32>
    %34 = vector.broadcast %33 : vector<1x128xi32> to vector<16x128xi32>
    %35 = arith.cmpi eq, %32, %34 : vector<16x128xi32>
    %36 = arith.extui %35 : vector<16x128xi1> to vector<16x128xi32>
    %37 = arith.sitofp %36 : vector<16x128xi32> to vector<16x128xf32>
    %38 = arith.truncf %37 : vector<16x128xf32> to vector<16x128xbf16>
    %c0_19 = arith.constant 0 : index
    %c0_20 = arith.constant 0 : index
    %c0_21 = arith.constant 0 : index
    %39 = vector.load %arg8[%c0_19, %c0_20, %c0_21] : memref<1x8x16xf32, #tpu.memory_space<vmem>>, vector<1x8x16xf32>
    %40 = vector.shape_cast %39 : vector<1x8x16xf32> to vector<8x16xf32>
    %cst_22 = arith.constant dense<0.000000e+00> : vector<8x16xf32>
    %41 = tpu.matmul %31, %38, %cst_22 {dimension_numbers = #tpu.dot_dimension_numbers<[1], [1], [0], [0], [0, 0, 1, 0], [], []>} : vector<8x128xbf16>, vector<16x128xbf16>, vector<8x16xf32> -> vector<8x16xf32>
    %42 = arith.addf %40, %41 : vector<8x16xf32>
    %c0_23 = arith.constant 0 : index
    %c0_24 = arith.constant 0 : index
    %c0_25 = arith.constant 0 : index
    %43 = vector.load %arg8[%c0_23, %c0_24, %c0_25] : memref<1x8x16xf32, #tpu.memory_space<vmem>>, vector<1x8x16xf32>
    %44 = vector.shape_cast %43 : vector<1x8x16xf32> to vector<8x16xf32>
    %45 = vector.shape_cast %42 : vector<8x16xf32> to vector<1x8x16xf32>
    tpu.vector_store %arg8[%c0_23, %c0_24, %c0_25], %45 {strides = array<i32>} : memref<1x8x16xf32, #tpu.memory_space<vmem>>, vector<1x8x16xf32>,
    return
  }
  func.func @transform_0(%arg0: i32, %arg1: i32) -> (i32, i32, i32) {
    %c1_i32 = arith.constant 1 : i32
    %0 = arith.muli %arg0, %c1_i32 : i32
    %1 = arith.addi %0, %arg1 : i32
    %c0_i32 = arith.constant 0 : i32
    %c0_i32_0 = arith.constant 0 : i32
    %c0_i32_1 = arith.constant 0 : i32
    return %1, %c0_i32, %c0_i32_0 : i32, i32, i32
  }
  func.func @transform_1(%arg0: i32, %arg1: i32) -> (i32, i32) {
    %c1_i32 = arith.constant 1 : i32
    %0 = arith.muli %arg0, %c1_i32 : i32
    %1 = arith.addi %0, %arg1 : i32
    %c0_i32 = arith.constant 0 : i32
    %c0_i32_0 = arith.constant 0 : i32
    return %c0_i32, %1 : i32, i32
  }
  func.func @transform_2(%arg0: i32, %arg1: i32) -> (i32, i32) {
    %c1_i32 = arith.constant 1 : i32
    %0 = arith.muli %arg0, %c1_i32 : i32
    %1 = arith.addi %0, %arg1 : i32
    %c0_i32 = arith.constant 0 : i32
    %c0_i32_0 = arith.constant 0 : i32
    return %c0_i32, %1 : i32, i32
  }
  func.func @transform_3(%arg0: i32, %arg1: i32) -> (i32, i32) {
    %c0_i32 = arith.constant 0 : i32
    %c0_i32_0 = arith.constant 0 : i32
    %c0_i32_1 = arith.constant 0 : i32
    return %c0_i32, %c0_i32_0 : i32, i32
  }
  func.func @transform_4(%arg0: i32, %arg1: i32) -> (i32, i32) {
    %c0_i32 = arith.constant 0 : i32
    %c0_i32_0 = arith.constant 0 : i32
    %c0_i32_1 = arith.constant 0 : i32
    return %c0_i32, %c0_i32_0 : i32, i32
  }
  func.func @transform_5(%arg0: i32, %arg1: i32) -> (i32, i32) {
    %c0_i32 = arith.constant 0 : i32
    %c0_i32_0 = arith.constant 0 : i32
    %c0_i32_1 = arith.constant 0 : i32
    return %c0_i32, %c0_i32_0 : i32, i32
  }
  func.func @transform_6(%arg0: i32, %arg1: i32) -> (i32, i32, i32) {
    %c0_i32 = arith.constant 0 : i32
    %c0_i32_0 = arith.constant 0 : i32
    %c0_i32_1 = arith.constant 0 : i32
    return %arg0, %c0_i32, %c0_i32_0 : i32, i32, i32
  }
}

</mosaic_0001>

<llo_original>
// kernel: tpu_custom_call.1
$region0: #{tpu_custom_call.1}
  #allocation0 [shape = 'u32[]', space=smem, size = 0x4, offset = 0x4, fixed_abs, tag = 'smem constant byte address 0x4 - core index']
  #allocation1 [shape = 'u32[144,128]{1,0:T(1,128)}', space=vmem, size = 0x12000, scoped, tag = 'internal scratch']
  %s0 = inlined_call_operand.vmem [shape: bf16[1,16,256], index: 0, kind: input, shape index: {}]
  %s1 = inlined_call_operand.vmem [shape: f32[1,128], index: 1, kind: input, shape index: {}]
  %s2 = inlined_call_operand.vmem [shape: s32[1,128], index: 2, kind: input, shape index: {}]
  %s3 = inlined_call_operand.vmem [shape: bf16[32,16], index: 3, kind: input, shape index: {}]
  %s4 = inlined_call_operand.hbm [shape: bf16[32,32], index: 4, kind: input, shape index: {}]
  %s5 = inlined_call_operand.vmem [shape: bf16[16,32], index: 5, kind: input, shape index: {}]
  %s6 = inlined_call_operand.hbm [shape: f32[1,8,16], index: 6, kind: output, shape index: {}]
  %s7 = sld [smem:[#allocation0]]
  $region42: #{tpu_custom_call.1} parent=0
    _
  %s9 = ssub.s32 1, %s7
  %s10 = scalar_select 0, %s9, %s7
  $region1: #{tpu_custom_call.1} parent=0
    #allocation2 [shape = 'u8[8192]{0}', space=vmem, size = 0x2000, scoped, tag = 'input window, operand 4, single buffered']
    #allocation3 [shape = 's32[1]{0}', space=sflag, size = 0x4, scoped, tag = 'scoped memory for tpu_custom_call.1']
    #allocation4 [shape = 's32[1]{0}', space=sflag, size = 0x4, scoped, tag = 'scoped memory for tpu_custom_call.1']
    #allocation5 [shape = 'u8[4096]{0}', space=vmem, size = 0x1000, scoped, tag = 'output window, operand 0, single buffered']
    %11 = vsyncpa [#allocation3], 0
    %12 = vsyncpa [#allocation4], 0
    // Predicated region
    $region2: #{tpu_custom_call.1} parent=1 // pred_check
      _
    $region3: #{tpu_custom_call.1} parent=1 // pred_check_branch
      %14 = sbr.rel (0) target = $region5
    $region4: #{tpu_custom_call.1} parent=1 // pred_region
      %s15 = sadd.s32 0, 0
      %p16 = scmp.lt.s32.totalorder %s15, 0
      %s17 = scalar_select %p16, %s15, 0
      %s18 = smul.addr %s17, 4
      %s19 = smul.addr %s18, 4
      %s20 = scalar_lea.vmem %s0, %s19
      %s21 = sadd.s32 0, 0
    $region5: #{tpu_custom_call.1} parent=1 // pred_fallthru
      _
    // Predicated region
    $region6: #{tpu_custom_call.1} parent=1 // pred_check
      _
    $region7: #{tpu_custom_call.1} parent=1 // pred_check_branch
      %23 = sbr.rel (0) target = $region9
    $region8: #{tpu_custom_call.1} parent=1 // pred_region
      %s24 = sadd.s32 0, 0
      %p25 = scmp.lt.s32.totalorder %s24, 0
      %s26 = scalar_select %p25, %s24, 0
      %s27 = scalar_lea.vmem %s1, %s26
      %s28 = sadd.s32 0, 0
    $region9: #{tpu_custom_call.1} parent=1 // pred_fallthru
      _
    // Predicated region
    $region10: #{tpu_custom_call.1} parent=1 // pred_check
      _
    $region11: #{tpu_custom_call.1} parent=1 // pred_check_branch
      %30 = sbr.rel (0) target = $region13
    $region12: #{tpu_custom_call.1} parent=1 // pred_region
      %s31 = sadd.s32 0, 0
      %p32 = scmp.lt.s32.totalorder %s31, 0
      %s33 = scalar_select %p32, %s31, 0
      %s34 = scalar_lea.vmem %s2, %s33
      %s35 = sadd.s32 0, 0
    $region13: #{tpu_custom_call.1} parent=1 // pred_fallthru
      _
    // Predicated region
    $region14: #{tpu_custom_call.1} parent=1 // pred_check
      _
    $region15: #{tpu_custom_call.1} parent=1 // pred_check_branch
      %37 = sbr.rel (0) target = $region17
    $region16: #{tpu_custom_call.1} parent=1 // pred_region
      _
    $region17: #{tpu_custom_call.1} parent=1 // pred_fallthru
      _
    // Predicated region
    $region18: #{tpu_custom_call.1} parent=1 // pred_check
      _
    $region19: #{tpu_custom_call.1} parent=1 // pred_check_branch
      %39 = sbr.rel (0) target = $region21
    $region20: #{tpu_custom_call.1} parent=1 // pred_region
      %s41 = ssub.s32 256, 256
      %42 = vsyncadd [#allocation3], %s41
      %s43 = sshll.u32 [#allocation2], 4
      %s44 = int_to_ptr.vmem [resolvable:$true] %s43
      %49 = dma.hbm_to_vmem [thread:$0]  %s4, 256, %s44, [#allocation3], 64, 64, 4
    $region21: #{tpu_custom_call.1} parent=1 // pred_fallthru
      _
    // Predicated region
    $region22: #{tpu_custom_call.1} parent=1 // pred_check
      _
    $region23: #{tpu_custom_call.1} parent=1 // pred_check_branch
      %51 = sbr.rel (0) target = $region25
    $region24: #{tpu_custom_call.1} parent=1 // pred_region
      _
    $region25: #{tpu_custom_call.1} parent=1 // pred_fallthru
      _
    // Predicated region
    $region26: #{tpu_custom_call.1} parent=1 // pred_check
      _
    $region27: #{tpu_custom_call.1} parent=1 // pred_check_branch
      %53 = sbr.rel (0) target = $region29
    $region28: #{tpu_custom_call.1} parent=1 // pred_region
      %54 = dma.done [#allocation3], 256
    $region29: #{tpu_custom_call.1} parent=1 // pred_fallthru
      _
    %s55 = sadd.s32 0, 0
    %p56 = scmp.lt.s32.totalorder %s55, 0
    %s57 = scalar_select %p56, %s55, 0
    %s58 = smul.addr %s57, 4
    %s59 = smul.addr %s58, 4
    %s60 = scalar_lea.vmem %s0, %s59
    %s61 = sadd.s32 0, 0
    %p62 = scmp.lt.s32.totalorder %s61, 0
    %s63 = scalar_select %p62, %s61, 0
    %s64 = scalar_lea.vmem %s1, %s63
    %s65 = sadd.s32 0, 0
    %p66 = scmp.lt.s32.totalorder %s65, 0
    %s67 = scalar_select %p66, %s65, 0
    %s68 = scalar_lea.vmem %s2, %s67
    %s69 = sadd.s32 0, 0
    %p70 = scmp.lt.s32.totalorder %s69, 0
    %s71 = scalar_select %p70, %s69, 0
    %s72 = smul.addr %s71, 4
    %s73 = smul.addr %s72, 4
    %s74 = scalar_lea.vmem %s0, %s73
    %s75 = sadd.s32 0, 0
    %s76 = sadd.s32 0, 0
    %p77 = scmp.lt.s32.totalorder %s76, 0
    %s78 = scalar_select %p77, %s76, 0
    %s79 = scalar_lea.vmem %s1, %s78
    %s80 = sadd.s32 0, 0
    %s81 = sadd.s32 0, 0
    %p82 = scmp.lt.s32.totalorder %s81, 0
    %s83 = scalar_select %p82, %s81, 0
    %s84 = scalar_lea.vmem %s2, %s83
    %s85 = sadd.s32 0, 0
    %p87 = scmp.eq.s32.totalorder 0, 0
    // Predicated region
    $region30: #{tpu_custom_call.1} parent=1 // pred_check
      %p88 = pneg %p87
    $region31: #{tpu_custom_call.1} parent=1 // pred_check_branch
      %90 = sbr.rel (%p88) target = $region33
    $region32: #{tpu_custom_call.1} parent=1 // pred_region
      %vm91 = vcmask 130048
      %92 = vst.msk [vmem:[#allocation5] sm:$0xff] %vm91, 0.0
    $region33: #{tpu_custom_call.1} parent=1 // pred_fallthru
      _
    %v93 = vld [vmem:[%s74] sm:$0xff]
    %v94 = vld [vmem:[%s74 + $0x8] sm:$0xff]
    %v95 = vld [vmem:[%s3] sm:$0xf]
    %v96 = vld [vmem:[%s3 + $0x4] sm:$0xf]
    %v97 = vld [vmem:[%s3 + $0x8] sm:$0xf]
    %v98 = vld [vmem:[%s3 + $0xc] sm:$0xf]
    %v103 = vunpack.c.l.b16 %v95
    %v104 = vunpack.c.l.b16 %v96
    %v105 = vunpack.c.l.b16 %v97
    %v106 = vunpack.c.l.b16 %v98
    %v107 = vpack.c.b16 %v104, %v103
    %v108 = vpack.c.b16 %v106, %v105
    %v111 = vunpack.c.l.b16 %v93
    %v112 = vunpack.c.h.b16 %v93
    %v113 = vunpack.c.l.b16 %v94
    %v114 = vunpack.c.h.b16 %v94
    %v115 = vpack.c.b16 %v113, %v111
    %v116 = vpack.c.b16 %v114, %v112
    %vm119 = vcmask 130048
    %v121 = vsel %vm119, %v107, 0
    %v124 = vsel %vm119, %v108, 0
    %126 = vmatprep.subr.bf16.mxu0 0
    %127 = vmatpush1.bf16.msra.mxu0 0
    %128 = vmatprep.subr.bf16.mxu0 0
    %129 = vmatpush1.bf16.msra.mxu0 0
    %130 = vmatprep.subr.bf16.mxu0 0
    %131 = vmatpush1.bf16.msra.mxu0 0
    %132 = vmatprep.subr.bf16.mxu0 0
    %133 = vmatpush1.bf16.msra.mxu0 0
    %134 = vmatprep.subr.bf16.mxu0 0
    %135 = vmatpush1.bf16.msra.mxu0 0
    %136 = vmatprep.subr.bf16.mxu0 0
    %137 = vmatpush1.bf16.msra.mxu0 0
    %138 = vmatprep.subr.bf16.mxu0 0
    %139 = vmatpush1.bf16.msra.mxu0 0
    %140 = vmatprep.subr.bf16.mxu0 %v116
    %141 = vmatpush1.bf16.msra.mxu0 %v115
    %142 = vmatprep.subr.bf16.mxu0 0
    %143 = vmatpush2.bf16.msra.mxu0 0
    %144 = vmatprep.subr.bf16.mxu0 0
    %145 = vmatpush2.bf16.msra.mxu0 0
    %146 = vmatprep.subr.bf16.mxu0 0
    %147 = vmatpush2.bf16.msra.mxu0 0
    %148 = vmatprep.subr.bf16.mxu0 0
    %149 = vmatpush2.bf16.msra.mxu0 0
    %150 = vmatprep.subr.bf16.mxu0 0
    %151 = vmatpush2.bf16.msra.mxu0 0
    %152 = vmatprep.subr.bf16.mxu0 0
    %153 = vmatpush2.bf16.msra.mxu0 0
    %154 = vmatprep.subr.bf16.mxu0 0
    %155 = vmatpush2.bf16.msra.mxu0 0
    %156 = vmatprep.subr.bf16.mxu0 0
    %157 = vmatpush2.bf16.msra.mxu0 0
    %158 = vmatprep.mubr.bf16.mxu0 0
    %159 = vmatmul.mubr.bf16.gmra.mxu0 %v121
    %v160 = vpop.f32.mrf.mxu0
    %v161 = vadd.f32 0.0, %v160
    %v162 = vpop.f32.mrf.mxu0
    %v163 = vadd.f32 0.0, %v162
    %v164 = vpop.f32.mrf.mxu0
    %v165 = vadd.f32 0.0, %v164
    %v166 = vpop.f32.mrf.mxu0
    %v167 = vadd.f32 0.0, %v166
    %168 = vmatprep.mubr.bf16.mxu0 0
    %169 = vmatmul.mubr.bf16.gmra.mxu0 %v124
    %v170 = vpop.f32.mrf.mxu0
    %v171 = vadd.f32 0.0, %v170
    %v172 = vpop.f32.mrf.mxu0
    %v173 = vadd.f32 0.0, %v172
    %v174 = vpop.f32.mrf.mxu0
    %v175 = vadd.f32 0.0, %v174
    %v176 = vpop.f32.mrf.mxu0
    %v177 = vadd.f32 0.0, %v176
    %178 = vdwg.mxu0
    %v179 = vmax.f32 %v161, 0.0
    %v180 = vmax.f32 %v163, 0.0
    %v181 = vmax.f32 %v165, 0.0
    %v182 = vmax.f32 %v167, 0.0
    %v183 = vmax.f32 %v171, 0.0
    %v184 = vmax.f32 %v173, 0.0
    %v185 = vmax.f32 %v175, 0.0
    %v186 = vmax.f32 %v177, 0.0
    %v187 = vpack.c.bf16 %v181, %v179
    %v188 = vpack.c.bf16 %v182, %v180
    %v189 = vpack.c.bf16 %v185, %v183
    %v190 = vpack.c.bf16 %v186, %v184
    %v191 = vld [vmem:[#allocation2] sm:$0xf]
    %v192 = vld [vmem:[#allocation2 + $0x4] sm:$0xf]
    %v193 = vld [vmem:[#allocation2 + $0x8] sm:$0xf]
    %v194 = vld [vmem:[#allocation2 + $0xc] sm:$0xf]
    %v199 = vunpack.c.l.b16 %v191
    %v200 = vunpack.c.l.b16 %v192
    %v201 = vunpack.c.l.b16 %v193
    %v202 = vunpack.c.l.b16 %v194
    %v203 = vpack.c.b16 %v200, %v199
    %v204 = vpack.c.b16 %v202, %v201
    %vm205 = vcmask 261120
    %v207 = vsel %vm205, %v203, 0
    %v210 = vsel %vm205, %v204, 0
    %212 = vmatprep.subr.bf16.mxu0 0
    %213 = vmatpush1.bf16.msra.mxu0 0
    %214 = vmatprep.subr.bf16.mxu0 0
    %215 = vmatpush1.bf16.msra.mxu0 0
    %216 = vmatprep.subr.bf16.mxu0 0
    %217 = vmatpush1.bf16.msra.mxu0 0
    %218 = vmatprep.subr.bf16.mxu0 0
    %219 = vmatpush1.bf16.msra.mxu0 0
    %220 = vmatprep.subr.bf16.mxu0 0
    %221 = vmatpush1.bf16.msra.mxu0 0
    %222 = vmatprep.subr.bf16.mxu0 0
    %223 = vmatpush1.bf16.msra.mxu0 0
    %224 = vmatprep.subr.bf16.mxu0 %v190
    %225 = vmatpush1.bf16.msra.mxu0 %v189
    %226 = vmatprep.subr.bf16.mxu0 %v188
    %227 = vmatpush1.bf16.msra.mxu0 %v187
    %228 = vmatprep.subr.bf16.mxu0 0
    %229 = vmatpush2.bf16.msra.mxu0 0
    %230 = vmatprep.subr.bf16.mxu0 0
    %231 = vmatpush2.bf16.msra.mxu0 0
    %232 = vmatprep.subr.bf16.mxu0 0
    %233 = vmatpush2.bf16.msra.mxu0 0
    %234 = vmatprep.subr.bf16.mxu0 0
    %235 = vmatpush2.bf16.msra.mxu0 0
    %236 = vmatprep.subr.bf16.mxu0 0
    %237 = vmatpush2.bf16.msra.mxu0 0
    %238 = vmatprep.subr.bf16.mxu0 0
    %239 = vmatpush2.bf16.msra.mxu0 0
    %240 = vmatprep.subr.bf16.mxu0 0
    %241 = vmatpush2.bf16.msra.mxu0 0
    %242 = vmatprep.subr.bf16.mxu0 0
    %243 = vmatpush2.bf16.msra.mxu0 0
    %244 = vmatprep.mubr.bf16.mxu0 0
    %245 = vmatmul.mubr.bf16.gmra.mxu0 %v207
    %v246 = vpop.f32.mrf.mxu0
    %v247 = vadd.f32 0.0, %v246
    %v248 = vpop.f32.mrf.mxu0
    %v249 = vadd.f32 0.0, %v248
    %v250 = vpop.f32.mrf.mxu0
    %v251 = vadd.f32 0.0, %v250
    %v252 = vpop.f32.mrf.mxu0
    %v253 = vadd.f32 0.0, %v252
    %254 = vmatprep.mubr.bf16.mxu0 0
    %255 = vmatmul.mubr.bf16.gmra.mxu0 %v210
    %v256 = vpop.f32.mrf.mxu0
    %v257 = vadd.f32 0.0, %v256
    %v258 = vpop.f32.mrf.mxu0
    %v259 = vadd.f32 0.0, %v258
    %v260 = vpop.f32.mrf.mxu0
    %v261 = vadd.f32 0.0, %v260
    %v262 = vpop.f32.mrf.mxu0
    %v263 = vadd.f32 0.0, %v262
    %264 = vdwg.mxu0
    %v265 = vmax.f32 %v247, 0.0
    %v266 = vmax.f32 %v249, 0.0
    %v267 = vmax.f32 %v251, 0.0
    %v268 = vmax.f32 %v253, 0.0
    %v269 = vmax.f32 %v257, 0.0
    %v270 = vmax.f32 %v259, 0.0
    %v271 = vmax.f32 %v261, 0.0
    %v272 = vmax.f32 %v263, 0.0
    %v273 = vpack.c.bf16 %v267, %v265
    %v274 = vpack.c.bf16 %v268, %v266
    %v275 = vpack.c.bf16 %v271, %v269
    %v276 = vpack.c.bf16 %v272, %v270
    %v277 = vld [vmem:[%s5] sm:$0xf]
    %v278 = vld [vmem:[%s5 + $0x4] sm:$0xf]
    %v281 = vunpack.c.l.b16 %v277
    %v282 = vunpack.c.l.b16 %v278
    %v283 = vpack.c.b16 %v282, %v281
    %v285 = vsel %vm205, %v283, 0
    %287 = vmatprep.subr.bf16.mxu0 0
    %288 = vmatpush1.bf16.msra.mxu0 0
    %289 = vmatprep.subr.bf16.mxu0 0
    %290 = vmatpush1.bf16.msra.mxu0 0
    %291 = vmatprep.subr.bf16.mxu0 0
    %292 = vmatpush1.bf16.msra.mxu0 0
    %293 = vmatprep.subr.bf16.mxu0 0
    %294 = vmatpush1.bf16.msra.mxu0 0
    %295 = vmatprep.subr.bf16.mxu0 0
    %296 = vmatpush1.bf16.msra.mxu0 0
    %297 = vmatprep.subr.bf16.mxu0 0
    %298 = vmatpush1.bf16.msra.mxu0 0
    %299 = vmatprep.subr.bf16.mxu0 %v276
    %300 = vmatpush1.bf16.msra.mxu0 %v275
    %301 = vmatprep.subr.bf16.mxu0 %v274
    %302 = vmatpush1.bf16.msra.mxu0 %v273
    %303 = vmatprep.subr.bf16.mxu0 0
    %304 = vmatpush2.bf16.msra.mxu0 0
    %305 = vmatprep.subr.bf16.mxu0 0
    %306 = vmatpush2.bf16.msra.mxu0 0
    %307 = vmatprep.subr.bf16.mxu0 0
    %308 = vmatpush2.bf16.msra.mxu0 0
    %309 = vmatprep.subr.bf16.mxu0 0
    %310 = vmatpush2.bf16.msra.mxu0 0
    %311 = vmatprep.subr.bf16.mxu0 0
    %312 = vmatpush2.bf16.msra.mxu0 0
    %313 = vmatprep.subr.bf16.mxu0 0
    %314 = vmatpush2.bf16.msra.mxu0 0
    %315 = vmatprep.subr.bf16.mxu0 0
    %316 = vmatpush2.bf16.msra.mxu0 0
    %317 = vmatprep.subr.bf16.mxu0 0
    %318 = vmatpush2.bf16.msra.mxu0 0
    %319 = vmatprep.mubr.bf16.mxu0 0
    %320 = vmatmul.mubr.bf16.gmra.mxu0 %v285
    %v321 = vpop.f32.mrf.mxu0
    %v322 = vpop.f32.mrf.mxu0
    %v323 = vadd.f32 0.0, %v322
    %v324 = vpop.f32.mrf.mxu0
    %v325 = vadd.f32 0.0, %v324
    %v326 = vpop.f32.mrf.mxu0
    %327 = vdwg.mxu0
    %v328 = vmul.f32 %v325, %v323
    %v329 = vrot.slane %v328, 4
    %v330 = vadd.f32 %v328, %v329
    %v331 = vrot.slane %v330, 2
    %v332 = vadd.f32 %v330, %v331
    %v333 = vrot.slane %v332, 1
    %v334 = vadd.f32 %v332, %v333
    %v335 = vxor.u32 %v334, 2147483648
    %v336 = vmul.f32 %v335, 1.442695
    %v337 = vpow.pop %v336
    %v338 = vadd.f32 %v337, 1.0
    %v339 = vrcp.pop %v338
    %v340 = vmul.f32 1.0, %v339
    %v341 = vld [vmem:[%s79] sm:$0x1]
    %v342 = vmul.f32 %v340, %v341
    %v343 = vlaneseq
    %v344 = vshrl.u32 %v343, 7
    %v345 = vsub.s32 0, %v344
    %v346 = vrot.slane %v342, %v345
    %v347 = vmul.f32 %v323, %v346
    %v348 = vpack.c.bf16 %v347, %v347
    %v349 = vlaneseq
    %v350 = vshrl.u32 %v349, 7
    %v351 = vadd.s32 %v350, 8
    %v352 = vld [vmem:[%s84] sm:$0x1]
    %v353 = vlaneseq
    %v354 = vshrl.u32 %v353, 7
    %v355 = vsub.s32 0, %v354
    %v356 = vrot.slane %v352, %v355
    %vm357 = vcmp.eq.s32.totalorder %v350, %v356
    %vm358 = vcmp.eq.s32.totalorder %v351, %v356
    %v359 = vsel %vm357, 1, 0
    %v360 = vsel %vm358, 1, 0
    %v361 = vcvt.s32.f32 %v359
    %v362 = vcvt.s32.f32 %v360
    %v363 = vpack.c.bf16 %v362, %v361
    %v364 = vld [vmem:[#allocation5] sm:$0xff]
    %365 = vmatprep.subr.bf16.mxu0 0
    %366 = vmatpush1.bf16.xpose.msra.mxu0 0
    %367 = vmatprep.subr.bf16.mxu0 0
    %368 = vmatpush1.bf16.xpose.msra.mxu0 0
    %369 = vmatprep.subr.bf16.mxu0 0
    %370 = vmatpush1.bf16.xpose.msra.mxu0 0
    %371 = vmatprep.subr.bf16.mxu0 0
    %372 = vmatpush1.bf16.xpose.msra.mxu0 0
    %373 = vmatprep.subr.bf16.mxu0 0
    %374 = vmatpush1.bf16.xpose.msra.mxu0 0
    %375 = vmatprep.subr.bf16.mxu0 0
    %376 = vmatpush1.bf16.xpose.msra.mxu0 0
    %377 = vmatprep.subr.bf16.mxu0 0
    %378 = vmatpush1.bf16.xpose.msra.mxu0 0
    %379 = vmatprep.subr.bf16.mxu0 0
    %380 = vmatpush1.bf16.xpose.msra.mxu0 %v363
    %381 = vmatprep.subr.bf16.mxu0 0
    %382 = vmatpush2.bf16.xpose.msra.mxu0 0
    %383 = vmatprep.subr.bf16.mxu0 0
    %384 = vmatpush2.bf16.xpose.msra.mxu0 0
    %385 = vmatprep.subr.bf16.mxu0 0
    %386 = vmatpush2.bf16.xpose.msra.mxu0 0
    %387 = vmatprep.subr.bf16.mxu0 0
    %388 = vmatpush2.bf16.xpose.msra.mxu0 0
    %389 = vmatprep.subr.bf16.mxu0 0
    %390 = vmatpush2.bf16.xpose.msra.mxu0 0
    %391 = vmatprep.subr.bf16.mxu0 0
    %392 = vmatpush2.bf16.xpose.msra.mxu0 0
    %393 = vmatprep.subr.bf16.mxu0 0
    %394 = vmatpush2.bf16.xpose.msra.mxu0 0
    %395 = vmatprep.subr.bf16.mxu0 0
    %396 = vmatpush2.bf16.xpose.msra.mxu0 0
    %397 = vmatprep.mubr.bf16.mxu0 0
    %398 = vmatmul.mubr.bf16.gmra.mxu0 %v348
    %v399 = vpop.f32.mrf.mxu0
    %v400 = vadd.f32 0.0, %v399
    %v401 = vpop.f32.mrf.mxu0
    %v402 = vpop.f32.mrf.mxu0
    %v403 = vpop.f32.mrf.mxu0
    %404 = vdwg.mxu0
    %v405 = vadd.f32 %v364, %v400
    %406 = vst.msk [vmem:[#allocation5] sm:$0xff] %vm119, %v405
    // Predicated region
    $region34: #{tpu_custom_call.1} parent=1 // pred_check
      _
    $region35: #{tpu_custom_call.1} parent=1 // pred_check_branch
      %408 = sbr.rel (0) target = $region37
    $region36: #{tpu_custom_call.1} parent=1 // pred_region
      %s410 = ssub.s32 128, 128
      %411 = vsyncadd [#allocation4], %s410
      %s413 = sshll.u32 [#allocation5], 4
      %s414 = int_to_ptr.vmem [resolvable:$true] %s413
      %416 = dma.vmem_to_hbm [thread:$0]  %s414, 128, %s6, [#allocation4]
    $region37: #{tpu_custom_call.1} parent=1 // pred_fallthru
      _
    // Predicated region
    $region38: #{tpu_custom_call.1} parent=1 // pred_check
      _
    $region39: #{tpu_custom_call.1} parent=1 // pred_check_branch
      %418 = sbr.rel (0) target = $region41
    $region40: #{tpu_custom_call.1} parent=1 // pred_region
      %419 = dma.done [#allocation4], 128
    $region41: #{tpu_custom_call.1} parent=1 // pred_fallthru
      _
    %420 = vsyncpa [#allocation3], 1
    %421 = vsyncpa [#allocation4], 1

</llo_original>
